<compile_context>
chip_gen: v6e
topology: v6e:2x2x1
jax: 0.10.0
libtpu: 0.0.40
codegen_flags: <defaults>
</compile_context>

<pallas_src>
import functools

import jax
import jax.numpy as jnp
from jax import lax
from jax.experimental import pallas as pl
from jax.experimental.pallas import tpu as pltpu


def _round_up(x, m):
    return ((x + m - 1) // m) * m


# ----------------------------------------------------------------------------
# Pallas kernel
# ----------------------------------------------------------------------------
def _xlstm_kernel(rf_ref, wih_ref, whh_ref, b_ref, wfc_ref, bfc_ref, *rest,
                  hidden, seq_len, bounded):
    if bounded:
        ub_ref, out_ref = rest
    else:
        (out_ref,) = rest

    H = hidden
    T = seq_len
    G4 = wih_ref.shape[1]          # padded 4*H (multiple of 128; == 128 for H=32)

    # --- Batched input projection for all timesteps (off the serial chain).
    # (T, D_in) @ (D_in, G4) -> (T, G4); kept as a value (one vreg for T<=8).
    xp = (jnp.dot(rf_ref[...], wih_ref[...],
                  preferred_element_type=jnp.float32)
          + b_ref[...])

    # whh is only (H, G4) f32 (16 KiB for H=32): cheap to keep resident.
    whh = whh_ref[...]

    # Fused activation constants.  Gate order is [i, f, o, g]: lanes [0, 3H)
    # get sigmoid(x) = 0.5*tanh(0.5*x) + 0.5, lanes [3H, 4H) get tanh(x), so a
    # single EUP tanh per step covers all four gates.
    lane = lax.broadcasted_iota(jnp.int32, (1, G4), 1)
    is_sig = lane < 3 * H
    pre_scale = jnp.where(is_sig, 0.5, 1.0)
    post_scale = pre_scale
    post_off = jnp.where(is_sig, 0.5, 0.0)

    h = jnp.zeros((1, H), jnp.float32)
    c = jnp.zeros((1, H), jnp.float32)
    hs_rows = []
    for t in range(T):                     # small static T: fully unrolled
        pre = xp[t:t + 1, :] + jnp.dot(h, whh,
                                       preferred_element_type=jnp.float32)
        act = jnp.tanh(pre * pre_scale) * post_scale + post_off
        i_g = act[:, 0 * H:1 * H]
        f_g = act[:, 1 * H:2 * H]
        o_g = act[:, 2 * H:3 * H]
        g_g = act[:, 3 * H:4 * H]
        c = f_g * c + i_g * g_g
        h = o_g * jnp.tanh(c)
        hs_rows.append(h)

    hs = jnp.concatenate(hs_rows, axis=0)  # (T, H), stays in registers

    # --- Batched FC + optional tanh bound; single lane-dense (T, OP) store.
    y = (jnp.dot(hs, wfc_ref[...], preferred_element_type=jnp.float32)
         + bfc_ref[...])
    if bounded:
        # (tanh(y) + 1) * (u_b - 0) / 2 + 0
        y = (jnp.tanh(y) + 1.0) * ub_ref[...] * 0.5
    out_ref[...] = y


# ----------------------------------------------------------------------------
# Wrapper (gate packing / reordering + pallas_call)
# ----------------------------------------------------------------------------
def _reorder_and_pad_gate_cols(w, H, G4):
    """(rows, 4H) in PyTorch gate order [i,f,g,o] -> (rows, G4) order [i,f,o,g]."""
    i = w[:, 0 * H:1 * H]
    f = w[:, 1 * H:2 * H]
    g = w[:, 2 * H:3 * H]
    o = w[:, 3 * H:4 * H]
    packed = jnp.concatenate([i, f, o, g], axis=1).astype(jnp.float32)
    if G4 > 4 * H:
        packed = jnp.pad(packed, ((0, 0), (0, G4 - 4 * H)))
    return packed


def x_lstm_forward(r, feature, params, *, len_lambda, len_feature,
                   hidden_size, len_x, bounded):
    r = r.reshape(-1, len_lambda).astype(jnp.float32)
    feature = feature.reshape(-1, len_feature).astype(jnp.float32)
    r_f = jnp.concatenate([r, feature], axis=1)            # (T, D_in)
    T, D_in = r_f.shape

    H = hidden_size
    G4 = _round_up(4 * H, 128)     # packed gate width (== 4H == 128 for H=32)
    OP = _round_up(len_x, 128)     # lane-dense padded output width

    w_ih, w_hh, b_ih, b_hh, w_fc, b_fc, u_b = params

    # (in, out) layout, gates packed & reordered to [i, f, o, g].
    wih_p = _reorder_and_pad_gate_cols(jnp.transpose(w_ih), H, G4)   # (D_in, G4)
    whh_p = _reorder_and_pad_gate_cols(jnp.transpose(w_hh), H, G4)   # (H, G4)
    b_p = _reorder_and_pad_gate_cols((b_ih + b_hh).reshape(1, -1), H, G4)

    wfc_p = jnp.zeros((H, OP), jnp.float32).at[:, :len_x].set(
        jnp.transpose(w_fc))                                         # (H, OP)
    bfc_p = jnp.zeros((1, OP), jnp.float32).at[:, :len_x].set(
        b_fc.reshape(1, -1))

    inputs = [r_f, wih_p, whh_p, b_p, wfc_p, bfc_p]
    if bounded:
        ub_p = jnp.zeros((1, OP), jnp.float32).at[:, :len_x].set(
            u_b.reshape(1, -1))
        inputs.append(ub_p)

    kernel = functools.partial(_xlstm_kernel, hidden=H, seq_len=T,
                               bounded=bounded)

    # Cost estimate from true (unpadded) problem dimensions.
    flops = 2 * T * (D_in * 4 * H + H * 4 * H + H * len_x)
    transcendentals = T * (4 * H + H) + (T * len_x if bounded else 0)
    bytes_accessed = 4 * (T * D_in + D_in * 4 * H + H * 4 * H + 4 * H
                          + H * len_x + len_x
                          + (len_x if bounded else 0) + T * len_x)

    vmem = pl.BlockSpec(memory_space=pltpu.MemorySpace.VMEM)
    out_p = pl.pallas_call(
        kernel,
        out_shape=jax.ShapeDtypeStruct((T, OP), jnp.float32),
        in_specs=[vmem] * len(inputs),
        out_specs=vmem,
        cost_estimate=pl.CostEstimate(flops=flops,
                                      transcendentals=transcendentals,
                                      bytes_accessed=bytes_accessed),
    )(*inputs)

    return out_p[:, :len_x]


# ----------------------------------------------------------------------------
# Pure-JAX reference (matches PyTorch nn.LSTM unbatched + nn.Linear semantics)
# ----------------------------------------------------------------------------
def x_lstm_reference(r, feature, params, *, len_lambda, len_feature,
                     hidden_size, len_x, bounded):
    r = r.reshape(-1, len_lambda).astype(jnp.float32)
    feature = feature.reshape(-1, len_feature).astype(jnp.float32)
    r_f = jnp.concatenate([r, feature], axis=1)
    w_ih, w_hh, b_ih, b_hh, w_fc, b_fc, u_b = params
    H = hidden_size

    def step(carry, x_t):
        h, c = carry
        gates = x_t @ w_ih.T + h @ w_hh.T + b_ih + b_hh
        i_g = jax.nn.sigmoid(gates[0 * H:1 * H])
        f_g = jax.nn.sigmoid(gates[1 * H:2 * H])
        g_g = jnp.tanh(gates[2 * H:3 * H])
        o_g = jax.nn.sigmoid(gates[3 * H:4 * H])
        c_new = f_g * c + i_g * g_g
        h_new = o_g * jnp.tanh(c_new)
        return (h_new, c_new), h_new

    init = (jnp.zeros((H,), jnp.float32), jnp.zeros((H,), jnp.float32))
    _, hs = lax.scan(step, init, r_f)
    out = hs @ w_fc.T + b_fc
    if bounded:
        out = (jnp.tanh(out) + 1.0) * u_b * 0.5
    return out


# ----------------------------------------------------------------------------
if __name__ == "__main__":
    # Small, deterministic problem sizes implied by the module's forward.
    T = 8                 # sequence length (rows after .view(-1, len_lambda))
    len_lambda = 4
    len_feature = 4
    hidden_size = 32      # arg_nn.hidden_size
    len_x = 3
    D_in = len_lambda + len_feature

    key = jax.random.PRNGKey(0)
    keys = jax.random.split(key, 8)

    # Deterministic parameter init (shapes follow nn.LSTM / nn.Linear).
    scale_lstm = 1.0 / jnp.sqrt(hidden_size)
    w_ih = jax.random.uniform(keys[0], (4 * hidden_size, D_in),
                              minval=-scale_lstm, maxval=scale_lstm)
    w_hh = jax.random.uniform(keys[1], (4 * hidden_size, hidden_size),
                              minval=-scale_lstm, maxval=scale_lstm)
    b_ih = jax.random.uniform(keys[2], (4 * hidden_size,),
                              minval=-scale_lstm, maxval=scale_lstm)
    b_hh = jax.random.uniform(keys[3], (4 * hidden_size,),
                              minval=-scale_lstm, maxval=scale_lstm)
    scale_fc = 1.0 / jnp.sqrt(hidden_size)
    w_fc = jax.random.uniform(keys[4], (len_x, hidden_size),
                              minval=-scale_fc, maxval=scale_fc)
    b_fc = jax.random.uniform(keys[5], (len_x,),
                              minval=-scale_fc, maxval=scale_fc)
    # arg_nn.u_b has len_x + 1 entries; the module uses u_b[:-1].
    u_b_full = jnp.array([1.5, 2.0, 0.75, 9.0], dtype=jnp.float32)
    u_b = u_b_full[:-1]

    params = (w_ih, w_hh, b_ih, b_hh, w_fc, b_fc, u_b)

    # Example inputs (r views to (T, len_lambda), feature to (T, len_feature)).
    r = jax.random.normal(keys[6], (T, len_lambda), dtype=jnp.float32)
    feature = jax.random.normal(keys[7], (T, len_feature), dtype=jnp.float32)

    cfg = dict(len_lambda=len_lambda, len_feature=len_feature,
               hidden_size=hidden_size, len_x=len_x)

    ok = True
    for bounded in (False, True):
        out = x_lstm_forward(r, feature, params, bounded=bounded, **cfg)
        out = jax.block_until_ready(out)
        ref = x_lstm_reference(r, feature, params, bounded=bounded, **cfg)
        ok = ok and bool(jnp.allclose(out, ref, atol=2e-5, rtol=2e-5))

    if ok:
        print("KERNEL_OK")
    else:
        print("MISMATCH")
</pallas_src>

<mosaic_0001>
module attributes {stable_mosaic.version = 11 : i64} {
  func.func @_xlstm_kernel(%arg0: memref<8x8xf32, #tpu.memory_space<vmem>>, %arg1: memref<8x128xf32, #tpu.memory_space<vmem>>, %arg2: memref<32x128xf32, #tpu.memory_space<vmem>>, %arg3: memref<1x128xf32, #tpu.memory_space<vmem>>, %arg4: memref<32x128xf32, #tpu.memory_space<vmem>>, %arg5: memref<1x128xf32, #tpu.memory_space<vmem>>, %arg6: memref<8x128xf32, #tpu.memory_space<vmem>>) attributes {dimension_semantics = [], scalar_prefetch = 0 : i64, scratch_operands = 0 : i64, tpu.core_type = #tpu.core_type<tc>} {
    %c0 = arith.constant 0 : index
    %c0_0 = arith.constant 0 : index
    %0 = vector.load %arg0[%c0, %c0_0] : memref<8x8xf32, #tpu.memory_space<vmem>>, vector<8x8xf32>
    %c0_1 = arith.constant 0 : index
    %c0_2 = arith.constant 0 : index
    %1 = vector.load %arg1[%c0_1, %c0_2] : memref<8x128xf32, #tpu.memory_space<vmem>>, vector<8x128xf32>
    %cst = arith.constant dense<0.000000e+00> : vector<8x128xf32>
    %2 = tpu.matmul %0, %1, %cst {dimension_numbers = #tpu.dot_dimension_numbers<[1], [0], [0], [1], [0, 0, 1, 1], [], []>} : vector<8x8xf32>, vector<8x128xf32>, vector<8x128xf32> -> vector<8x128xf32>
    %c0_3 = arith.constant 0 : index
    %c0_4 = arith.constant 0 : index
    %3 = vector.load %arg3[%c0_3, %c0_4] : memref<1x128xf32, #tpu.memory_space<vmem>>, vector<1x128xf32>
    %4 = vector.broadcast %3 : vector<1x128xf32> to vector<8x128xf32>
    %5 = arith.addf %2, %4 : vector<8x128xf32>
    %c0_5 = arith.constant 0 : index
    %c0_6 = arith.constant 0 : index
    %6 = vector.load %arg2[%c0_5, %c0_6] : memref<32x128xf32, #tpu.memory_space<vmem>>, vector<32x128xf32>
    %7 = tpu.iota {dimensions = array<i32: 1>} : vector<1x128xi32>
    %c96_i32 = arith.constant 96 : i32
    %8 = vector.broadcast %c96_i32 : i32 to vector<1x128xi32>
    %9 = arith.cmpi slt, %7, %8 : vector<1x128xi32>
    %cst_7 = arith.constant 5.000000e-01 : f32
    %cst_8 = arith.constant 1.000000e+00 : f32
    %10 = vector.broadcast %cst_7 : f32 to vector<1x128xf32>
    %11 = vector.broadcast %cst_8 : f32 to vector<1x128xf32>
    %12 = arith.select %9, %10, %11 : vector<1x128xi1>, vector<1x128xf32>
    %cst_9 = arith.constant 5.000000e-01 : f32
    %cst_10 = arith.constant 0.000000e+00 : f32
    %13 = vector.broadcast %cst_9 : f32 to vector<1x128xf32>
    %14 = vector.broadcast %cst_10 : f32 to vector<1x128xf32>
    %15 = arith.select %9, %13, %14 : vector<1x128xi1>, vector<1x128xf32>
    %cst_11 = arith.constant 0.000000e+00 : f32
    %16 = vector.broadcast %cst_11 : f32 to vector<1x32xf32>
    %cst_12 = arith.constant 0.000000e+00 : f32
    %17 = vector.broadcast %cst_12 : f32 to vector<1x32xf32>
    %18 = vector.extract_strided_slice %5 {offsets = [0, 0], sizes = [1, 128], strides = [1, 1]} : vector<8x128xf32> to vector<1x128xf32>
    %cst_13 = arith.constant dense<0.000000e+00> : vector<1x128xf32>
    %19 = tpu.matmul %16, %6, %cst_13 {dimension_numbers = #tpu.dot_dimension_numbers<[1], [0], [0], [1], [0, 0, 1, 1], [], []>} : vector<1x32xf32>, vector<32x128xf32>, vector<1x128xf32> -> vector<1x128xf32>
    %20 = arith.addf %18, %19 : vector<1x128xf32>
    %21 = arith.mulf %20, %12 : vector<1x128xf32>
    %22 = math.tanh %21 : vector<1x128xf32>
    %23 = arith.mulf %22, %12 : vector<1x128xf32>
    %24 = arith.addf %23, %15 : vector<1x128xf32>
    %25 = vector.extract_strided_slice %24 {offsets = [0, 0], sizes = [1, 32], strides = [1, 1]} : vector<1x128xf32> to vector<1x32xf32>
    %26 = vector.extract_strided_slice %24 {offsets = [0, 32], sizes = [1, 32], strides = [1, 1]} : vector<1x128xf32> to vector<1x32xf32>
    %27 = vector.extract_strided_slice %24 {offsets = [0, 64], sizes = [1, 32], strides = [1, 1]} : vector<1x128xf32> to vector<1x32xf32>
    %28 = vector.extract_strided_slice %24 {offsets = [0, 96], sizes = [1, 32], strides = [1, 1]} : vector<1x128xf32> to vector<1x32xf32>
    %29 = arith.mulf %26, %17 : vector<1x32xf32>
    %30 = arith.mulf %25, %28 : vector<1x32xf32>
    %31 = arith.addf %29, %30 : vector<1x32xf32>
    %32 = math.tanh %31 : vector<1x32xf32>
    %33 = arith.mulf %27, %32 : vector<1x32xf32>
    %34 = vector.extract_strided_slice %5 {offsets = [1, 0], sizes = [1, 128], strides = [1, 1]} : vector<8x128xf32> to vector<1x128xf32>
    %cst_14 = arith.constant dense<0.000000e+00> : vector<1x128xf32>
    %35 = tpu.matmul %33, %6, %cst_14 {dimension_numbers = #tpu.dot_dimension_numbers<[1], [0], [0], [1], [0, 0, 1, 1], [], []>} : vector<1x32xf32>, vector<32x128xf32>, vector<1x128xf32> -> vector<1x128xf32>
    %36 = arith.addf %34, %35 : vector<1x128xf32>
    %37 = arith.mulf %36, %12 : vector<1x128xf32>
    %38 = math.tanh %37 : vector<1x128xf32>
    %39 = arith.mulf %38, %12 : vector<1x128xf32>
    %40 = arith.addf %39, %15 : vector<1x128xf32>
    %41 = vector.extract_strided_slice %40 {offsets = [0, 0], sizes = [1, 32], strides = [1, 1]} : vector<1x128xf32> to vector<1x32xf32>
    %42 = vector.extract_strided_slice %40 {offsets = [0, 32], sizes = [1, 32], strides = [1, 1]} : vector<1x128xf32> to vector<1x32xf32>
    %43 = vector.extract_strided_slice %40 {offsets = [0, 64], sizes = [1, 32], strides = [1, 1]} : vector<1x128xf32> to vector<1x32xf32>
    %44 = vector.extract_strided_slice %40 {offsets = [0, 96], sizes = [1, 32], strides = [1, 1]} : vector<1x128xf32> to vector<1x32xf32>
    %45 = arith.mulf %42, %31 : vector<1x32xf32>
    %46 = arith.mulf %41, %44 : vector<1x32xf32>
    %47 = arith.addf %45, %46 : vector<1x32xf32>
    %48 = math.tanh %47 : vector<1x32xf32>
    %49 = arith.mulf %43, %48 : vector<1x32xf32>
    %50 = vector.extract_strided_slice %5 {offsets = [2, 0], sizes = [1, 128], strides = [1, 1]} : vector<8x128xf32> to vector<1x128xf32>
    %cst_15 = arith.constant dense<0.000000e+00> : vector<1x128xf32>
    %51 = tpu.matmul %49, %6, %cst_15 {dimension_numbers = #tpu.dot_dimension_numbers<[1], [0], [0], [1], [0, 0, 1, 1], [], []>} : vector<1x32xf32>, vector<32x128xf32>, vector<1x128xf32> -> vector<1x128xf32>
    %52 = arith.addf %50, %51 : vector<1x128xf32>
    %53 = arith.mulf %52, %12 : vector<1x128xf32>
    %54 = math.tanh %53 : vector<1x128xf32>
    %55 = arith.mulf %54, %12 : vector<1x128xf32>
    %56 = arith.addf %55, %15 : vector<1x128xf32>
    %57 = vector.extract_strided_slice %56 {offsets = [0, 0], sizes = [1, 32], strides = [1, 1]} : vector<1x128xf32> to vector<1x32xf32>
    %58 = vector.extract_strided_slice %56 {offsets = [0, 32], sizes = [1, 32], strides = [1, 1]} : vector<1x128xf32> to vector<1x32xf32>
    %59 = vector.extract_strided_slice %56 {offsets = [0, 64], sizes = [1, 32], strides = [1, 1]} : vector<1x128xf32> to vector<1x32xf32>
    %60 = vector.extract_strided_slice %56 {offsets = [0, 96], sizes = [1, 32], strides = [1, 1]} : vector<1x128xf32> to vector<1x32xf32>
    %61 = arith.mulf %58, %47 : vector<1x32xf32>
    %62 = arith.mulf %57, %60 : vector<1x32xf32>
    %63 = arith.addf %61, %62 : vector<1x32xf32>
    %64 = math.tanh %63 : vector<1x32xf32>
    %65 = arith.mulf %59, %64 : vector<1x32xf32>
    %66 = vector.extract_strided_slice %5 {offsets = [3, 0], sizes = [1, 128], strides = [1, 1]} : vector<8x128xf32> to vector<1x128xf32>
    %cst_16 = arith.constant dense<0.000000e+00> : vector<1x128xf32>
    %67 = tpu.matmul %65, %6, %cst_16 {dimension_numbers = #tpu.dot_dimension_numbers<[1], [0], [0], [1], [0, 0, 1, 1], [], []>} : vector<1x32xf32>, vector<32x128xf32>, vector<1x128xf32> -> vector<1x128xf32>
    %68 = arith.addf %66, %67 : vector<1x128xf32>
    %69 = arith.mulf %68, %12 : vector<1x128xf32>
    %70 = math.tanh %69 : vector<1x128xf32>
    %71 = arith.mulf %70, %12 : vector<1x128xf32>
    %72 = arith.addf %71, %15 : vector<1x128xf32>
    %73 = vector.extract_strided_slice %72 {offsets = [0, 0], sizes = [1, 32], strides = [1, 1]} : vector<1x128xf32> to vector<1x32xf32>
    %74 = vector.extract_strided_slice %72 {offsets = [0, 32], sizes = [1, 32], strides = [1, 1]} : vector<1x128xf32> to vector<1x32xf32>
    %75 = vector.extract_strided_slice %72 {offsets = [0, 64], sizes = [1, 32], strides = [1, 1]} : vector<1x128xf32> to vector<1x32xf32>
    %76 = vector.extract_strided_slice %72 {offsets = [0, 96], sizes = [1, 32], strides = [1, 1]} : vector<1x128xf32> to vector<1x32xf32>
    %77 = arith.mulf %74, %63 : vector<1x32xf32>
    %78 = arith.mulf %73, %76 : vector<1x32xf32>
    %79 = arith.addf %77, %78 : vector<1x32xf32>
    %80 = math.tanh %79 : vector<1x32xf32>
    %81 = arith.mulf %75, %80 : vector<1x32xf32>
    %82 = vector.extract_strided_slice %5 {offsets = [4, 0], sizes = [1, 128], strides = [1, 1]} : vector<8x128xf32> to vector<1x128xf32>
    %cst_17 = arith.constant dense<0.000000e+00> : vector<1x128xf32>
    %83 = tpu.matmul %81, %6, %cst_17 {dimension_numbers = #tpu.dot_dimension_numbers<[1], [0], [0], [1], [0, 0, 1, 1], [], []>} : vector<1x32xf32>, vector<32x128xf32>, vector<1x128xf32> -> vector<1x128xf32>
    %84 = arith.addf %82, %83 : vector<1x128xf32>
    %85 = arith.mulf %84, %12 : vector<1x128xf32>
    %86 = math.tanh %85 : vector<1x128xf32>
    %87 = arith.mulf %86, %12 : vector<1x128xf32>
    %88 = arith.addf %87, %15 : vector<1x128xf32>
    %89 = vector.extract_strided_slice %88 {offsets = [0, 0], sizes = [1, 32], strides = [1, 1]} : vector<1x128xf32> to vector<1x32xf32>
    %90 = vector.extract_strided_slice %88 {offsets = [0, 32], sizes = [1, 32], strides = [1, 1]} : vector<1x128xf32> to vector<1x32xf32>
    %91 = vector.extract_strided_slice %88 {offsets = [0, 64], sizes = [1, 32], strides = [1, 1]} : vector<1x128xf32> to vector<1x32xf32>
    %92 = vector.extract_strided_slice %88 {offsets = [0, 96], sizes = [1, 32], strides = [1, 1]} : vector<1x128xf32> to vector<1x32xf32>
    %93 = arith.mulf %90, %79 : vector<1x32xf32>
    %94 = arith.mulf %89, %92 : vector<1x32xf32>
    %95 = arith.addf %93, %94 : vector<1x32xf32>
    %96 = math.tanh %95 : vector<1x32xf32>
    %97 = arith.mulf %91, %96 : vector<1x32xf32>
    %98 = vector.extract_strided_slice %5 {offsets = [5, 0], sizes = [1, 128], strides = [1, 1]} : vector<8x128xf32> to vector<1x128xf32>
    %cst_18 = arith.constant dense<0.000000e+00> : vector<1x128xf32>
    %99 = tpu.matmul %97, %6, %cst_18 {dimension_numbers = #tpu.dot_dimension_numbers<[1], [0], [0], [1], [0, 0, 1, 1], [], []>} : vector<1x32xf32>, vector<32x128xf32>, vector<1x128xf32> -> vector<1x128xf32>
    %100 = arith.addf %98, %99 : vector<1x128xf32>
    %101 = arith.mulf %100, %12 : vector<1x128xf32>
    %102 = math.tanh %101 : vector<1x128xf32>
    %103 = arith.mulf %102, %12 : vector<1x128xf32>
    %104 = arith.addf %103, %15 : vector<1x128xf32>
    %105 = vector.extract_strided_slice %104 {offsets = [0, 0], sizes = [1, 32], strides = [1, 1]} : vector<1x128xf32> to vector<1x32xf32>
    %106 = vector.extract_strided_slice %104 {offsets = [0, 32], sizes = [1, 32], strides = [1, 1]} : vector<1x128xf32> to vector<1x32xf32>
    %107 = vector.extract_strided_slice %104 {offsets = [0, 64], sizes = [1, 32], strides = [1, 1]} : vector<1x128xf32> to vector<1x32xf32>
    %108 = vector.extract_strided_slice %104 {offsets = [0, 96], sizes = [1, 32], strides = [1, 1]} : vector<1x128xf32> to vector<1x32xf32>
    %109 = arith.mulf %106, %95 : vector<1x32xf32>
    %110 = arith.mulf %105, %108 : vector<1x32xf32>
    %111 = arith.addf %109, %110 : vector<1x32xf32>
    %112 = math.tanh %111 : vector<1x32xf32>
    %113 = arith.mulf %107, %112 : vector<1x32xf32>
    %114 = vector.extract_strided_slice %5 {offsets = [6, 0], sizes = [1, 128], strides = [1, 1]} : vector<8x128xf32> to vector<1x128xf32>
    %cst_19 = arith.constant dense<0.000000e+00> : vector<1x128xf32>
    %115 = tpu.matmul %113, %6, %cst_19 {dimension_numbers = #tpu.dot_dimension_numbers<[1], [0], [0], [1], [0, 0, 1, 1], [], []>} : vector<1x32xf32>, vector<32x128xf32>, vector<1x128xf32> -> vector<1x128xf32>
    %116 = arith.addf %114, %115 : vector<1x128xf32>
    %117 = arith.mulf %116, %12 : vector<1x128xf32>
    %118 = math.tanh %117 : vector<1x128xf32>
    %119 = arith.mulf %118, %12 : vector<1x128xf32>
    %120 = arith.addf %119, %15 : vector<1x128xf32>
    %121 = vector.extract_strided_slice %120 {offsets = [0, 0], sizes = [1, 32], strides = [1, 1]} : vector<1x128xf32> to vector<1x32xf32>
    %122 = vector.extract_strided_slice %120 {offsets = [0, 32], sizes = [1, 32], strides = [1, 1]} : vector<1x128xf32> to vector<1x32xf32>
    %123 = vector.extract_strided_slice %120 {offsets = [0, 64], sizes = [1, 32], strides = [1, 1]} : vector<1x128xf32> to vector<1x32xf32>
    %124 = vector.extract_strided_slice %120 {offsets = [0, 96], sizes = [1, 32], strides = [1, 1]} : vector<1x128xf32> to vector<1x32xf32>
    %125 = arith.mulf %122, %111 : vector<1x32xf32>
    %126 = arith.mulf %121, %124 : vector<1x32xf32>
    %127 = arith.addf %125, %126 : vector<1x32xf32>
    %128 = math.tanh %127 : vector<1x32xf32>
    %129 = arith.mulf %123, %128 : vector<1x32xf32>
    %130 = vector.extract_strided_slice %5 {offsets = [7, 0], sizes = [1, 128], strides = [1, 1]} : vector<8x128xf32> to vector<1x128xf32>
    %cst_20 = arith.constant dense<0.000000e+00> : vector<1x128xf32>
    %131 = tpu.matmul %129, %6, %cst_20 {dimension_numbers = #tpu.dot_dimension_numbers<[1], [0], [0], [1], [0, 0, 1, 1], [], []>} : vector<1x32xf32>, vector<32x128xf32>, vector<1x128xf32> -> vector<1x128xf32>
    %132 = arith.addf %130, %131 : vector<1x128xf32>
    %133 = arith.mulf %132, %12 : vector<1x128xf32>
    %134 = math.tanh %133 : vector<1x128xf32>
    %135 = arith.mulf %134, %12 : vector<1x128xf32>
    %136 = arith.addf %135, %15 : vector<1x128xf32>
    %137 = vector.extract_strided_slice %136 {offsets = [0, 0], sizes = [1, 32], strides = [1, 1]} : vector<1x128xf32> to vector<1x32xf32>
    %138 = vector.extract_strided_slice %136 {offsets = [0, 32], sizes = [1, 32], strides = [1, 1]} : vector<1x128xf32> to vector<1x32xf32>
    %139 = vector.extract_strided_slice %136 {offsets = [0, 64], sizes = [1, 32], strides = [1, 1]} : vector<1x128xf32> to vector<1x32xf32>
    %140 = vector.extract_strided_slice %136 {offsets = [0, 96], sizes = [1, 32], strides = [1, 1]} : vector<1x128xf32> to vector<1x32xf32>
    %141 = arith.mulf %138, %127 : vector<1x32xf32>
    %142 = arith.mulf %137, %140 : vector<1x32xf32>
    %143 = arith.addf %141, %142 : vector<1x32xf32>
    %144 = math.tanh %143 : vector<1x32xf32>
    %145 = arith.mulf %139, %144 : vector<1x32xf32>
    %146 = tpu.concatenate %33, %49, %65, %81, %97, %113, %129, %145 in 0 : vector<1x32xf32>, vector<1x32xf32>, vector<1x32xf32>, vector<1x32xf32>, vector<1x32xf32>, vector<1x32xf32>, vector<1x32xf32>, vector<1x32xf32> -> vector<8x32xf32>
    %c0_21 = arith.constant 0 : index
    %c0_22 = arith.constant 0 : index
    %147 = vector.load %arg4[%c0_21, %c0_22] : memref<32x128xf32, #tpu.memory_space<vmem>>, vector<32x128xf32>
    %cst_23 = arith.constant dense<0.000000e+00> : vector<8x128xf32>
    %148 = tpu.matmul %146, %147, %cst_23 {dimension_numbers = #tpu.dot_dimension_numbers<[1], [0], [0], [1], [0, 0, 1, 1], [], []>} : vector<8x32xf32>, vector<32x128xf32>, vector<8x128xf32> -> vector<8x128xf32>
    %c0_24 = arith.constant 0 : index
    %c0_25 = arith.constant 0 : index
    %149 = vector.load %arg5[%c0_24, %c0_25] : memref<1x128xf32, #tpu.memory_space<vmem>>, vector<1x128xf32>
    %150 = vector.broadcast %149 : vector<1x128xf32> to vector<8x128xf32>
    %151 = arith.addf %148, %150 : vector<8x128xf32>
    %c0_26 = arith.constant 0 : index
    %c0_27 = arith.constant 0 : index
    %152 = vector.load %arg6[%c0_26, %c0_27] : memref<8x128xf32, #tpu.memory_space<vmem>>, vector<8x128xf32>
    tpu.vector_store %arg6[%c0_26, %c0_27], %151 {strides = array<i32>} : memref<8x128xf32, #tpu.memory_space<vmem>>, vector<8x128xf32>,
    return
  }
}

</mosaic_0001>

<llo_original>
// kernel: tpu_custom_call.1
$region0: #{tpu_custom_call.1}
  #allocation0 [shape = 'u32[]', space=smem, size = 0x4, offset = 0x4, fixed_abs, tag = 'smem constant byte address 0x4 - core index']
  #allocation1 [shape = 'u32[144,128]{1,0:T(1,128)}', space=vmem, size = 0x12000, scoped, tag = 'internal scratch']
  %s0 = inlined_call_operand.hbm [shape: f32[8,8], index: 0, kind: input, shape index: {}]
  %s1 = inlined_call_operand.hbm [shape: f32[8,128], index: 1, kind: input, shape index: {}]
  %s2 = inlined_call_operand.hbm [shape: f32[32,128], index: 2, kind: input, shape index: {}]
  %s3 = inlined_call_operand.vmem [shape: f32[1,128], index: 3, kind: input, shape index: {}]
  %s4 = inlined_call_operand.hbm [shape: f32[32,128], index: 4, kind: input, shape index: {}]
  %s5 = inlined_call_operand.vmem [shape: f32[1,128], index: 5, kind: input, shape index: {}]
  %s6 = inlined_call_operand.hbm [shape: f32[8,128], index: 6, kind: output, shape index: {}]
  %s7 = sld [smem:[#allocation0]]
  $region50: #{tpu_custom_call.1} parent=0
    _
  %s9 = ssub.s32 1, %s7
  %s10 = scalar_select 0, %s9, %s7
  $region1: #{tpu_custom_call.1} parent=0
    #allocation2 [shape = 'u8[4096]{0}', space=vmem, size = 0x1000, scoped, tag = 'input window, operand 0, single buffered']
    #allocation3 [shape = 's32[1]{0}', space=sflag, size = 0x4, scoped, tag = 'scoped memory for tpu_custom_call.1']
    #allocation4 [shape = 's32[1]{0}', space=sflag, size = 0x4, scoped, tag = 'scoped memory for tpu_custom_call.1']
    #allocation5 [shape = 'u8[4096]{0}', space=vmem, size = 0x1000, scoped, tag = 'input window, operand 1, single buffered']
    #allocation6 [shape = 's32[1]{0}', space=sflag, size = 0x4, scoped, tag = 'scoped memory for tpu_custom_call.1']
    #allocation7 [shape = 'u8[16384]{0}', space=vmem, size = 0x4000, scoped, tag = 'input window, operand 2, single buffered']
    #allocation8 [shape = 'u8[16384]{0}', space=vmem, size = 0x4000, scoped, tag = 'input window, operand 4, single buffered']
    #allocation9 [shape = 's32[1]{0}', space=sflag, size = 0x4, scoped, tag = 'scoped memory for tpu_custom_call.1']
    #allocation10 [shape = 'u8[4096]{0}', space=vmem, size = 0x1000, scoped, tag = 'output window, operand 0, single buffered']
    %11 = vsyncpa [#allocation3], 0
    %12 = vsyncpa [#allocation6], 0
    %13 = vsyncpa [#allocation9], 0
    %14 = vsyncpa [#allocation4], 0
    // Predicated region
    $region2: #{tpu_custom_call.1} parent=1 // pred_check
      _
    $region3: #{tpu_custom_call.1} parent=1 // pred_check_branch
      %16 = sbr.rel (0) target = $region5
    $region4: #{tpu_custom_call.1} parent=1 // pred_region
      %s18 = ssub.s32 128, 128
      %19 = vsyncadd [#allocation3], %s18
      %s21 = sshll.u32 [#allocation2], 4
      %s22 = int_to_ptr.vmem [resolvable:$true] %s21
      %24 = dma.hbm_to_vmem [thread:$0]  %s0, 128, %s22, [#allocation3]
    $region5: #{tpu_custom_call.1} parent=1 // pred_fallthru
      _
    // Predicated region
    $region6: #{tpu_custom_call.1} parent=1 // pred_check
      _
    $region7: #{tpu_custom_call.1} parent=1 // pred_check_branch
      %26 = sbr.rel (0) target = $region9
    $region8: #{tpu_custom_call.1} parent=1 // pred_region
      %s28 = ssub.s32 128, 128
      %29 = vsyncadd [#allocation6], %s28
      %s31 = sshll.u32 [#allocation5], 4
      %s32 = int_to_ptr.vmem [resolvable:$true] %s31
      %34 = dma.hbm_to_vmem [thread:$0]  %s1, 128, %s32, [#allocation6]
    $region9: #{tpu_custom_call.1} parent=1 // pred_fallthru
      _
    // Predicated region
    $region10: #{tpu_custom_call.1} parent=1 // pred_check
      _
    $region11: #{tpu_custom_call.1} parent=1 // pred_check_branch
      %36 = sbr.rel (0) target = $region13
    $region12: #{tpu_custom_call.1} parent=1 // pred_region
      %s38 = ssub.s32 512, 512
      %39 = vsyncadd [#allocation6], %s38
      %s40 = sshll.u32 [#allocation7], 4
      %s41 = int_to_ptr.vmem [resolvable:$true] %s40
      %46 = dma.hbm_to_vmem [thread:$0]  %s2, 512, %s41, [#allocation6], 128, 128, 8
    $region13: #{tpu_custom_call.1} parent=1 // pred_fallthru
      _
    // Predicated region
    $region14: #{tpu_custom_call.1} parent=1 // pred_check
      _
    $region15: #{tpu_custom_call.1} parent=1 // pred_check_branch
      %48 = sbr.rel (0) target = $region17
    $region16: #{tpu_custom_call.1} parent=1 // pred_region
      _
    $region17: #{tpu_custom_call.1} parent=1 // pred_fallthru
      _
    // Predicated region
    $region18: #{tpu_custom_call.1} parent=1 // pred_check
      _
    $region19: #{tpu_custom_call.1} parent=1 // pred_check_branch
      %50 = sbr.rel (0) target = $region21
    $region20: #{tpu_custom_call.1} parent=1 // pred_region
      %s52 = ssub.s32 512, 512
      %53 = vsyncadd [#allocation9], %s52
      %s54 = sshll.u32 [#allocation8], 4
      %s55 = int_to_ptr.vmem [resolvable:$true] %s54
      %60 = dma.hbm_to_vmem [thread:$0]  %s4, 512, %s55, [#allocation9], 128, 128, 8
    $region21: #{tpu_custom_call.1} parent=1 // pred_fallthru
      _
    // Predicated region
    $region22: #{tpu_custom_call.1} parent=1 // pred_check
      _
    $region23: #{tpu_custom_call.1} parent=1 // pred_check_branch
      %62 = sbr.rel (0) target = $region25
    $region24: #{tpu_custom_call.1} parent=1 // pred_region
      _
    $region25: #{tpu_custom_call.1} parent=1 // pred_fallthru
      _
    // Predicated region
    $region26: #{tpu_custom_call.1} parent=1 // pred_check
      _
    $region27: #{tpu_custom_call.1} parent=1 // pred_check_branch
      %64 = sbr.rel (0) target = $region29
    $region28: #{tpu_custom_call.1} parent=1 // pred_region
      %65 = dma.done [#allocation3], 128
    $region29: #{tpu_custom_call.1} parent=1 // pred_fallthru
      _
    // Predicated region
    $region30: #{tpu_custom_call.1} parent=1 // pred_check
      _
    $region31: #{tpu_custom_call.1} parent=1 // pred_check_branch
      %67 = sbr.rel (0) target = $region33
    $region32: #{tpu_custom_call.1} parent=1 // pred_region
      %68 = dma.done [#allocation6], 128
    $region33: #{tpu_custom_call.1} parent=1 // pred_fallthru
      _
    // Predicated region
    $region34: #{tpu_custom_call.1} parent=1 // pred_check
      _
    $region35: #{tpu_custom_call.1} parent=1 // pred_check_branch
      %70 = sbr.rel (0) target = $region37
    $region36: #{tpu_custom_call.1} parent=1 // pred_region
      %71 = dma.done [#allocation6], 512
    $region37: #{tpu_custom_call.1} parent=1 // pred_fallthru
      _
    // Predicated region
    $region38: #{tpu_custom_call.1} parent=1 // pred_check
      _
    $region39: #{tpu_custom_call.1} parent=1 // pred_check_branch
      %73 = sbr.rel (0) target = $region41
    $region40: #{tpu_custom_call.1} parent=1 // pred_region
      %74 = dma.done [#allocation9], 512
    $region41: #{tpu_custom_call.1} parent=1 // pred_fallthru
      _
    %v75 = vld [vmem:[#allocation2] sm:$0xff]
    %v76 = vld [vmem:[#allocation5] sm:$0xff]
    %v77 = vld [vmem:[%s3] sm:$0x1]
    %v79 = vlaneseq
    %v80 = vshrl.u32 %v79, 7
    %v81 = vsub.s32 0, %v80
    %v82 = vrot.slane %v77, %v81
    %vm84 = vcmask 64512
    %v86 = vsel %vm84, %v75, 0
    %88 = vmatprep.subr.mxu0 0.0
    %89 = vmatpush1.msra.mxu0 0.0
    %90 = vmatprep.subr.mxu0 0.0
    %91 = vmatpush1.msra.mxu0 0.0
    %92 = vmatprep.subr.mxu0 0.0
    %93 = vmatpush1.msra.mxu0 0.0
    %94 = vmatprep.subr.mxu0 0.0
    %95 = vmatpush1.msra.mxu0 0.0
    %96 = vmatprep.subr.mxu0 0.0
    %97 = vmatpush1.msra.mxu0 0.0
    %98 = vmatprep.subr.mxu0 0.0
    %99 = vmatpush1.msra.mxu0 0.0
    %100 = vmatprep.subr.mxu0 0.0
    %101 = vmatpush1.msra.mxu0 0.0
    %102 = vmatprep.subr.mxu0 0.0
    %103 = vmatpush1.msra.mxu0 0.0
    %104 = vmatprep.subr.mxu0 0.0
    %105 = vmatpush1.msra.mxu0 0.0
    %106 = vmatprep.subr.mxu0 0.0
    %107 = vmatpush1.msra.mxu0 0.0
    %108 = vmatprep.subr.mxu0 0.0
    %109 = vmatpush1.msra.mxu0 0.0
    %110 = vmatprep.subr.mxu0 0.0
    %111 = vmatpush1.msra.mxu0 0.0
    %112 = vmatprep.subr.mxu0 0.0
    %113 = vmatpush1.msra.mxu0 0.0
    %114 = vmatprep.subr.mxu0 0.0
    %115 = vmatpush1.msra.mxu0 0.0
    %116 = vmatprep.subr.mxu0 0.0
    %117 = vmatpush1.msra.mxu0 0.0
    %118 = vmatprep.subr.mxu0 0.0
    %119 = vmatpush1.msra.mxu0 %v76
    %120 = vmatprep.subr.mxu0 0.0
    %121 = vmatpush2.msra.mxu0 0.0
    %122 = vmatprep.subr.mxu0 0.0
    %123 = vmatpush2.msra.mxu0 0.0
    %124 = vmatprep.subr.mxu0 0.0
    %125 = vmatpush2.msra.mxu0 0.0
    %126 = vmatprep.subr.mxu0 0.0
    %127 = vmatpush2.msra.mxu0 0.0
    %128 = vmatprep.subr.mxu0 0.0
    %129 = vmatpush2.msra.mxu0 0.0
    %130 = vmatprep.subr.mxu0 0.0
    %131 = vmatpush2.msra.mxu0 0.0
    %132 = vmatprep.subr.mxu0 0.0
    %133 = vmatpush2.msra.mxu0 0.0
    %134 = vmatprep.subr.mxu0 0.0
    %135 = vmatpush2.msra.mxu0 0.0
    %136 = vmatprep.subr.mxu0 0.0
    %137 = vmatpush2.msra.mxu0 0.0
    %138 = vmatprep.subr.mxu0 0.0
    %139 = vmatpush2.msra.mxu0 0.0
    %140 = vmatprep.subr.mxu0 0.0
    %141 = vmatpush2.msra.mxu0 0.0
    %142 = vmatprep.subr.mxu0 0.0
    %143 = vmatpush2.msra.mxu0 0.0
    %144 = vmatprep.subr.mxu0 0.0
    %145 = vmatpush2.msra.mxu0 0.0
    %146 = vmatprep.subr.mxu0 0.0
    %147 = vmatpush2.msra.mxu0 0.0
    %148 = vmatprep.subr.mxu0 0.0
    %149 = vmatpush2.msra.mxu0 0.0
    %150 = vmatprep.subr.mxu0 0.0
    %151 = vmatpush2.msra.mxu0 0.0
    %152 = vmatprep.mubr.f32.mxu0 0.0
    %153 = vmatmul.mubr.f32.gmra.mxu0 %v86
    %v154 = vpop.f32.mrf.mxu0
    %v155 = vadd.f32 %v82, %v154
    %v156 = vpop.f32.mrf.mxu0
    %157 = vdwg.mxu0
    %v158 = vld [vmem:[#allocation7] sm:$0xff]
    %v159 = vld [vmem:[#allocation7 + $0x8] sm:$0xff]
    %v160 = vld [vmem:[#allocation7 + $0x10] sm:$0xff]
    %v161 = vld [vmem:[#allocation7 + $0x18] sm:$0xff]
    %v162 = vlaneseq
    %v163 = vand.u32 %v162, 127
    %vm164 = vcmp.lt.s32.totalorder %v163, 96
    %v165 = vsel %vm164, 0.5, 1.0
    %v166 = vsel %vm164, 0.5, 0.0
    %vm167 = vcmask 261120
    %v169 = vsel %vm167, 0.0, 0
    %171 = vmatprep.subr.mxu0 0.0
    %172 = vmatpush1.msra.mxu0 0.0
    %173 = vmatprep.subr.mxu0 0.0
    %174 = vmatpush1.msra.mxu0 0.0
    %175 = vmatprep.subr.mxu0 0.0
    %176 = vmatpush1.msra.mxu0 0.0
    %177 = vmatprep.subr.mxu0 0.0
    %178 = vmatpush1.msra.mxu0 0.0
    %179 = vmatprep.subr.mxu0 0.0
    %180 = vmatpush1.msra.mxu0 0.0
    %181 = vmatprep.subr.mxu0 0.0
    %182 = vmatpush1.msra.mxu0 0.0
    %183 = vmatprep.subr.mxu0 0.0
    %184 = vmatpush1.msra.mxu0 0.0
    %185 = vmatprep.subr.mxu0 0.0
    %186 = vmatpush1.msra.mxu0 0.0
    %187 = vmatprep.subr.mxu0 0.0
    %188 = vmatpush1.msra.mxu0 0.0
    %189 = vmatprep.subr.mxu0 0.0
    %190 = vmatpush1.msra.mxu0 0.0
    %191 = vmatprep.subr.mxu0 0.0
    %192 = vmatpush1.msra.mxu0 0.0
    %193 = vmatprep.subr.mxu0 0.0
    %194 = vmatpush1.msra.mxu0 0.0
    %195 = vmatprep.subr.mxu0 0.0
    %196 = vmatpush1.msra.mxu0 %v161
    %197 = vmatprep.subr.mxu0 0.0
    %198 = vmatpush1.msra.mxu0 %v160
    %199 = vmatprep.subr.mxu0 0.0
    %200 = vmatpush1.msra.mxu0 %v159
    %201 = vmatprep.subr.mxu0 0.0
    %202 = vmatpush1.msra.mxu0 %v158
    %203 = vmatprep.subr.mxu0 0.0
    %204 = vmatpush2.msra.mxu0 0.0
    %205 = vmatprep.subr.mxu0 0.0
    %206 = vmatpush2.msra.mxu0 0.0
    %207 = vmatprep.subr.mxu0 0.0
    %208 = vmatpush2.msra.mxu0 0.0
    %209 = vmatprep.subr.mxu0 0.0
    %210 = vmatpush2.msra.mxu0 0.0
    %211 = vmatprep.subr.mxu0 0.0
    %212 = vmatpush2.msra.mxu0 0.0
    %213 = vmatprep.subr.mxu0 0.0
    %214 = vmatpush2.msra.mxu0 0.0
    %215 = vmatprep.subr.mxu0 0.0
    %216 = vmatpush2.msra.mxu0 0.0
    %217 = vmatprep.subr.mxu0 0.0
    %218 = vmatpush2.msra.mxu0 0.0
    %219 = vmatprep.subr.mxu0 0.0
    %220 = vmatpush2.msra.mxu0 0.0
    %221 = vmatprep.subr.mxu0 0.0
    %222 = vmatpush2.msra.mxu0 0.0
    %223 = vmatprep.subr.mxu0 0.0
    %224 = vmatpush2.msra.mxu0 0.0
    %225 = vmatprep.subr.mxu0 0.0
    %226 = vmatpush2.msra.mxu0 0.0
    %227 = vmatprep.subr.mxu0 0.0
    %228 = vmatpush2.msra.mxu0 0.0
    %229 = vmatprep.subr.mxu0 0.0
    %230 = vmatpush2.msra.mxu0 0.0
    %231 = vmatprep.subr.mxu0 0.0
    %232 = vmatpush2.msra.mxu0 0.0
    %233 = vmatprep.subr.mxu0 0.0
    %234 = vmatpush2.msra.mxu0 0.0
    %235 = vmatprep.mubr.f32.mxu0 0.0
    %236 = vmatmul.mubr.f32.gmra.mxu0 %v169
    %v237 = vpop.f32.mrf.mxu0
    %v238 = vadd.f32 0.0, %v237
    %v239 = vpop.f32.mrf.mxu0
    %240 = vdwg.mxu0
    %v241 = vadd.f32 %v155, %v238
    %v242 = vmul.f32 %v241, %v165
    %v243 = vtanh.pop %v242
    %v244 = vmul.f32 %v243, %v165
    %v245 = vadd.f32 %v244, %v166
    %v246 = vmul.f32 %v245, 0.0
    %248 = vrot.lane.b32.xlu0 %v245, 32
    %v249 = vpop.permute.xlu0 %248
    %v251 = vmul.f32 %v245, %v249
    %253 = vrot.lane.b32.xlu0 %v251, 32
    %v254 = vpop.permute.xlu0 %253
    %v256 = vadd.f32 %v246, %v254
    %v257 = vtanh.pop %v256
    %259 = vrot.lane.b32.xlu0 %v257, 32
    %v260 = vpop.permute.xlu0 %259
    %v262 = vmul.f32 %v245, %v260
    %264 = vrot.lane.b32.xlu0 %v262, 64
    %v265 = vpop.permute.xlu0 %264
    %v266 = vsel %vm167, %v265, 0
    %268 = vmatprep.subr.mxu0 0.0
    %269 = vmatpush1.msra.mxu0 0.0
    %270 = vmatprep.subr.mxu0 0.0
    %271 = vmatpush1.msra.mxu0 0.0
    %272 = vmatprep.subr.mxu0 0.0
    %273 = vmatpush1.msra.mxu0 0.0
    %274 = vmatprep.subr.mxu0 0.0
    %275 = vmatpush1.msra.mxu0 0.0
    %276 = vmatprep.subr.mxu0 0.0
    %277 = vmatpush1.msra.mxu0 0.0
    %278 = vmatprep.subr.mxu0 0.0
    %279 = vmatpush1.msra.mxu0 0.0
    %280 = vmatprep.subr.mxu0 0.0
    %281 = vmatpush1.msra.mxu0 0.0
    %282 = vmatprep.subr.mxu0 0.0
    %283 = vmatpush1.msra.mxu0 0.0
    %284 = vmatprep.subr.mxu0 0.0
    %285 = vmatpush1.msra.mxu0 0.0
    %286 = vmatprep.subr.mxu0 0.0
    %287 = vmatpush1.msra.mxu0 0.0
    %288 = vmatprep.subr.mxu0 0.0
    %289 = vmatpush1.msra.mxu0 0.0
    %290 = vmatprep.subr.mxu0 0.0
    %291 = vmatpush1.msra.mxu0 0.0
    %292 = vmatprep.subr.mxu0 0.0
    %293 = vmatpush1.msra.mxu0 %v161
    %294 = vmatprep.subr.mxu0 0.0
    %295 = vmatpush1.msra.mxu0 %v160
    %296 = vmatprep.subr.mxu0 0.0
    %297 = vmatpush1.msra.mxu0 %v159
    %298 = vmatprep.subr.mxu0 0.0
    %299 = vmatpush1.msra.mxu0 %v158
    %300 = vmatprep.subr.mxu0 0.0
    %301 = vmatpush2.msra.mxu0 0.0
    %302 = vmatprep.subr.mxu0 0.0
    %303 = vmatpush2.msra.mxu0 0.0
    %304 = vmatprep.subr.mxu0 0.0
    %305 = vmatpush2.msra.mxu0 0.0
    %306 = vmatprep.subr.mxu0 0.0
    %307 = vmatpush2.msra.mxu0 0.0
    %308 = vmatprep.subr.mxu0 0.0
    %309 = vmatpush2.msra.mxu0 0.0
    %310 = vmatprep.subr.mxu0 0.0
    %311 = vmatpush2.msra.mxu0 0.0
    %312 = vmatprep.subr.mxu0 0.0
    %313 = vmatpush2.msra.mxu0 0.0
    %314 = vmatprep.subr.mxu0 0.0
    %315 = vmatpush2.msra.mxu0 0.0
    %316 = vmatprep.subr.mxu0 0.0
    %317 = vmatpush2.msra.mxu0 0.0
    %318 = vmatprep.subr.mxu0 0.0
    %319 = vmatpush2.msra.mxu0 0.0
    %320 = vmatprep.subr.mxu0 0.0
    %321 = vmatpush2.msra.mxu0 0.0
    %322 = vmatprep.subr.mxu0 0.0
    %323 = vmatpush2.msra.mxu0 0.0
    %324 = vmatprep.subr.mxu0 0.0
    %325 = vmatpush2.msra.mxu0 0.0
    %326 = vmatprep.subr.mxu0 0.0
    %327 = vmatpush2.msra.mxu0 0.0
    %328 = vmatprep.subr.mxu0 0.0
    %329 = vmatpush2.msra.mxu0 0.0
    %330 = vmatprep.subr.mxu0 0.0
    %331 = vmatpush2.msra.mxu0 0.0
    %332 = vmatprep.mubr.f32.mxu0 0.0
    %333 = vmatmul.mubr.f32.gmra.mxu0 %v266
    %v334 = vpop.f32.mrf.mxu0
    %v335 = vadd.f32 0.0, %v334
    %v336 = vpop.f32.mrf.mxu0
    %337 = vdwg.mxu0
    %v339 = vrot.slane %v335, 7
    %v341 = vadd.f32 %v155, %v339
    %v342 = vmul.f32 %v341, %v165
    %v343 = vtanh.pop %v342
    %v344 = vmul.f32 %v343, %v165
    %v345 = vadd.f32 %v344, %v166
    %v347 = vrot.slane %v256, 7
    %v349 = vmul.f32 %v345, %v347
    %351 = vrot.lane.b32.xlu0 %v345, 32
    %v352 = vpop.permute.xlu0 %351
    %v354 = vmul.f32 %v345, %v352
    %356 = vrot.lane.b32.xlu0 %v354, 32
    %v357 = vpop.permute.xlu0 %356
    %v359 = vadd.f32 %v349, %v357
    %v360 = vtanh.pop %v359
    %362 = vrot.lane.b32.xlu0 %v360, 32
    %v363 = vpop.permute.xlu0 %362
    %v365 = vmul.f32 %v345, %v363
    %v367 = vrot.slane %v365, 1
    %368 = vrot.lane.b32.xlu0 %v367, 64
    %v369 = vpop.permute.xlu0 %368
    %v370 = vsel %vm167, %v369, 0
    %372 = vmatprep.subr.mxu0 0.0
    %373 = vmatpush1.msra.mxu0 0.0
    %374 = vmatprep.subr.mxu0 0.0
    %375 = vmatpush1.msra.mxu0 0.0
    %376 = vmatprep.subr.mxu0 0.0
    %377 = vmatpush1.msra.mxu0 0.0
    %378 = vmatprep.subr.mxu0 0.0
    %379 = vmatpush1.msra.mxu0 0.0
    %380 = vmatprep.subr.mxu0 0.0
    %381 = vmatpush1.msra.mxu0 0.0
    %382 = vmatprep.subr.mxu0 0.0
    %383 = vmatpush1.msra.mxu0 0.0
    %384 = vmatprep.subr.mxu0 0.0
    %385 = vmatpush1.msra.mxu0 0.0
    %386 = vmatprep.subr.mxu0 0.0
    %387 = vmatpush1.msra.mxu0 0.0
    %388 = vmatprep.subr.mxu0 0.0
    %389 = vmatpush1.msra.mxu0 0.0
    %390 = vmatprep.subr.mxu0 0.0
    %391 = vmatpush1.msra.mxu0 0.0
    %392 = vmatprep.subr.mxu0 0.0
    %393 = vmatpush1.msra.mxu0 0.0
    %394 = vmatprep.subr.mxu0 0.0
    %395 = vmatpush1.msra.mxu0 0.0
    %396 = vmatprep.subr.mxu0 0.0
    %397 = vmatpush1.msra.mxu0 %v161
    %398 = vmatprep.subr.mxu0 0.0
    %399 = vmatpush1.msra.mxu0 %v160
    %400 = vmatprep.subr.mxu0 0.0
    %401 = vmatpush1.msra.mxu0 %v159
    %402 = vmatprep.subr.mxu0 0.0
    %403 = vmatpush1.msra.mxu0 %v158
    %404 = vmatprep.subr.mxu0 0.0
    %405 = vmatpush2.msra.mxu0 0.0
    %406 = vmatprep.subr.mxu0 0.0
    %407 = vmatpush2.msra.mxu0 0.0
    %408 = vmatprep.subr.mxu0 0.0
    %409 = vmatpush2.msra.mxu0 0.0
    %410 = vmatprep.subr.mxu0 0.0
    %411 = vmatpush2.msra.mxu0 0.0
    %412 = vmatprep.subr.mxu0 0.0
    %413 = vmatpush2.msra.mxu0 0.0
    %414 = vmatprep.subr.mxu0 0.0
    %415 = vmatpush2.msra.mxu0 0.0
    %416 = vmatprep.subr.mxu0 0.0
    %417 = vmatpush2.msra.mxu0 0.0
    %418 = vmatprep.subr.mxu0 0.0
    %419 = vmatpush2.msra.mxu0 0.0
    %420 = vmatprep.subr.mxu0 0.0
    %421 = vmatpush2.msra.mxu0 0.0
    %422 = vmatprep.subr.mxu0 0.0
    %423 = vmatpush2.msra.mxu0 0.0
    %424 = vmatprep.subr.mxu0 0.0
    %425 = vmatpush2.msra.mxu0 0.0
    %426 = vmatprep.subr.mxu0 0.0
    %427 = vmatpush2.msra.mxu0 0.0
    %428 = vmatprep.subr.mxu0 0.0
    %429 = vmatpush2.msra.mxu0 0.0
    %430 = vmatprep.subr.mxu0 0.0
    %431 = vmatpush2.msra.mxu0 0.0
    %432 = vmatprep.subr.mxu0 0.0
    %433 = vmatpush2.msra.mxu0 0.0
    %434 = vmatprep.subr.mxu0 0.0
    %435 = vmatpush2.msra.mxu0 0.0
    %436 = vmatprep.mubr.f32.mxu0 0.0
    %437 = vmatmul.mubr.f32.gmra.mxu0 %v370
    %v438 = vpop.f32.mrf.mxu0
    %v439 = vadd.f32 0.0, %v438
    %v440 = vpop.f32.mrf.mxu0
    %441 = vdwg.mxu0
    %v443 = vrot.slane %v439, 6
    %v445 = vadd.f32 %v155, %v443
    %v446 = vmul.f32 %v445, %v165
    %v447 = vtanh.pop %v446
    %v448 = vmul.f32 %v447, %v165
    %v449 = vadd.f32 %v448, %v166
    %v451 = vrot.slane %v359, 7
    %v453 = vmul.f32 %v449, %v451
    %455 = vrot.lane.b32.xlu0 %v449, 32
    %v456 = vpop.permute.xlu0 %455
    %v458 = vmul.f32 %v449, %v456
    %460 = vrot.lane.b32.xlu0 %v458, 32
    %v461 = vpop.permute.xlu0 %460
    %v463 = vadd.f32 %v453, %v461
    %v464 = vtanh.pop %v463
    %466 = vrot.lane.b32.xlu0 %v464, 32
    %v467 = vpop.permute.xlu0 %466
    %v469 = vmul.f32 %v449, %v467
    %v471 = vrot.slane %v469, 2
    %472 = vrot.lane.b32.xlu0 %v471, 64
    %v473 = vpop.permute.xlu0 %472
    %v474 = vsel %vm167, %v473, 0
    %476 = vmatprep.subr.mxu0 0.0
    %477 = vmatpush1.msra.mxu0 0.0
    %478 = vmatprep.subr.mxu0 0.0
    %479 = vmatpush1.msra.mxu0 0.0
    %480 = vmatprep.subr.mxu0 0.0
    %481 = vmatpush1.msra.mxu0 0.0
    %482 = vmatprep.subr.mxu0 0.0
    %483 = vmatpush1.msra.mxu0 0.0
    %484 = vmatprep.subr.mxu0 0.0
    %485 = vmatpush1.msra.mxu0 0.0
    %486 = vmatprep.subr.mxu0 0.0
    %487 = vmatpush1.msra.mxu0 0.0
    %488 = vmatprep.subr.mxu0 0.0
    %489 = vmatpush1.msra.mxu0 0.0
    %490 = vmatprep.subr.mxu0 0.0
    %491 = vmatpush1.msra.mxu0 0.0
    %492 = vmatprep.subr.mxu0 0.0
    %493 = vmatpush1.msra.mxu0 0.0
    %494 = vmatprep.subr.mxu0 0.0
    %495 = vmatpush1.msra.mxu0 0.0
    %496 = vmatprep.subr.mxu0 0.0
    %497 = vmatpush1.msra.mxu0 0.0
    %498 = vmatprep.subr.mxu0 0.0
    %499 = vmatpush1.msra.mxu0 0.0
    %500 = vmatprep.subr.mxu0 0.0
    %501 = vmatpush1.msra.mxu0 %v161
    %502 = vmatprep.subr.mxu0 0.0
    %503 = vmatpush1.msra.mxu0 %v160
    %504 = vmatprep.subr.mxu0 0.0
    %505 = vmatpush1.msra.mxu0 %v159
    %506 = vmatprep.subr.mxu0 0.0
    %507 = vmatpush1.msra.mxu0 %v158
    %508 = vmatprep.subr.mxu0 0.0
    %509 = vmatpush2.msra.mxu0 0.0
    %510 = vmatprep.subr.mxu0 0.0
    %511 = vmatpush2.msra.mxu0 0.0
    %512 = vmatprep.subr.mxu0 0.0
    %513 = vmatpush2.msra.mxu0 0.0
    %514 = vmatprep.subr.mxu0 0.0
    %515 = vmatpush2.msra.mxu0 0.0
    %516 = vmatprep.subr.mxu0 0.0
    %517 = vmatpush2.msra.mxu0 0.0
    %518 = vmatprep.subr.mxu0 0.0
    %519 = vmatpush2.msra.mxu0 0.0
    %520 = vmatprep.subr.mxu0 0.0
    %521 = vmatpush2.msra.mxu0 0.0
    %522 = vmatprep.subr.mxu0 0.0
    %523 = vmatpush2.msra.mxu0 0.0
    %524 = vmatprep.subr.mxu0 0.0
    %525 = vmatpush2.msra.mxu0 0.0
    %526 = vmatprep.subr.mxu0 0.0
    %527 = vmatpush2.msra.mxu0 0.0
    %528 = vmatprep.subr.mxu0 0.0
    %529 = vmatpush2.msra.mxu0 0.0
    %530 = vmatprep.subr.mxu0 0.0
    %531 = vmatpush2.msra.mxu0 0.0
    %532 = vmatprep.subr.mxu0 0.0
    %533 = vmatpush2.msra.mxu0 0.0
    %534 = vmatprep.subr.mxu0 0.0
    %535 = vmatpush2.msra.mxu0 0.0
    %536 = vmatprep.subr.mxu0 0.0
    %537 = vmatpush2.msra.mxu0 0.0
    %538 = vmatprep.subr.mxu0 0.0
    %539 = vmatpush2.msra.mxu0 0.0
    %540 = vmatprep.mubr.f32.mxu0 0.0
    %541 = vmatmul.mubr.f32.gmra.mxu0 %v474
    %v542 = vpop.f32.mrf.mxu0
    %v543 = vadd.f32 0.0, %v542
    %v544 = vpop.f32.mrf.mxu0
    %545 = vdwg.mxu0
    %v547 = vrot.slane %v543, 5
    %v549 = vadd.f32 %v155, %v547
    %v550 = vmul.f32 %v549, %v165
    %v551 = vtanh.pop %v550
    %v552 = vmul.f32 %v551, %v165
    %v553 = vadd.f32 %v552, %v166
    %v555 = vrot.slane %v463, 7
    %v557 = vmul.f32 %v553, %v555
    %559 = vrot.lane.b32.xlu0 %v553, 32
    %v560 = vpop.permute.xlu0 %559
    %v562 = vmul.f32 %v553, %v560
    %564 = vrot.lane.b32.xlu0 %v562, 32
    %v565 = vpop.permute.xlu0 %564
    %v567 = vadd.f32 %v557, %v565
    %v568 = vtanh.pop %v567
    %570 = vrot.lane.b32.xlu0 %v568, 32
    %v571 = vpop.permute.xlu0 %570
    %v573 = vmul.f32 %v553, %v571
    %v575 = vrot.slane %v573, 3
    %576 = vrot.lane.b32.xlu0 %v575, 64
    %v577 = vpop.permute.xlu0 %576
    %v578 = vsel %vm167, %v577, 0
    %580 = vmatprep.subr.mxu0 0.0
    %581 = vmatpush1.msra.mxu0 0.0
    %582 = vmatprep.subr.mxu0 0.0
    %583 = vmatpush1.msra.mxu0 0.0
    %584 = vmatprep.subr.mxu0 0.0
    %585 = vmatpush1.msra.mxu0 0.0
    %586 = vmatprep.subr.mxu0 0.0
    %587 = vmatpush1.msra.mxu0 0.0
    %588 = vmatprep.subr.mxu0 0.0
    %589 = vmatpush1.msra.mxu0 0.0
    %590 = vmatprep.subr.mxu0 0.0
    %591 = vmatpush1.msra.mxu0 0.0
    %592 = vmatprep.subr.mxu0 0.0
    %593 = vmatpush1.msra.mxu0 0.0
    %594 = vmatprep.subr.mxu0 0.0
    %595 = vmatpush1.msra.mxu0 0.0
    %596 = vmatprep.subr.mxu0 0.0
    %597 = vmatpush1.msra.mxu0 0.0
    %598 = vmatprep.subr.mxu0 0.0
    %599 = vmatpush1.msra.mxu0 0.0
    %600 = vmatprep.subr.mxu0 0.0
    %601 = vmatpush1.msra.mxu0 0.0
    %602 = vmatprep.subr.mxu0 0.0
    %603 = vmatpush1.msra.mxu0 0.0
    %604 = vmatprep.subr.mxu0 0.0
    %605 = vmatpush1.msra.mxu0 %v161
    %606 = vmatprep.subr.mxu0 0.0
    %607 = vmatpush1.msra.mxu0 %v160
    %608 = vmatprep.subr.mxu0 0.0
    %609 = vmatpush1.msra.mxu0 %v159
    %610 = vmatprep.subr.mxu0 0.0
    %611 = vmatpush1.msra.mxu0 %v158
    %612 = vmatprep.subr.mxu0 0.0
    %613 = vmatpush2.msra.mxu0 0.0
    %614 = vmatprep.subr.mxu0 0.0
    %615 = vmatpush2.msra.mxu0 0.0
    %616 = vmatprep.subr.mxu0 0.0
    %617 = vmatpush2.msra.mxu0 0.0
    %618 = vmatprep.subr.mxu0 0.0
    %619 = vmatpush2.msra.mxu0 0.0
    %620 = vmatprep.subr.mxu0 0.0
    %621 = vmatpush2.msra.mxu0 0.0
    %622 = vmatprep.subr.mxu0 0.0
    %623 = vmatpush2.msra.mxu0 0.0
    %624 = vmatprep.subr.mxu0 0.0
    %625 = vmatpush2.msra.mxu0 0.0
    %626 = vmatprep.subr.mxu0 0.0
    %627 = vmatpush2.msra.mxu0 0.0
    %628 = vmatprep.subr.mxu0 0.0
    %629 = vmatpush2.msra.mxu0 0.0
    %630 = vmatprep.subr.mxu0 0.0
    %631 = vmatpush2.msra.mxu0 0.0
    %632 = vmatprep.subr.mxu0 0.0
    %633 = vmatpush2.msra.mxu0 0.0
    %634 = vmatprep.subr.mxu0 0.0
    %635 = vmatpush2.msra.mxu0 0.0
    %636 = vmatprep.subr.mxu0 0.0
    %637 = vmatpush2.msra.mxu0 0.0
    %638 = vmatprep.subr.mxu0 0.0
    %639 = vmatpush2.msra.mxu0 0.0
    %640 = vmatprep.subr.mxu0 0.0
    %641 = vmatpush2.msra.mxu0 0.0
    %642 = vmatprep.subr.mxu0 0.0
    %643 = vmatpush2.msra.mxu0 0.0
    %644 = vmatprep.mubr.f32.mxu0 0.0
    %645 = vmatmul.mubr.f32.gmra.mxu0 %v578
    %v646 = vpop.f32.mrf.mxu0
    %v647 = vadd.f32 0.0, %v646
    %v648 = vpop.f32.mrf.mxu0
    %649 = vdwg.mxu0
    %v651 = vrot.slane %v647, 4
    %v653 = vadd.f32 %v155, %v651
    %v654 = vmul.f32 %v653, %v165
    %v655 = vtanh.pop %v654
    %v656 = vmul.f32 %v655, %v165
    %v657 = vadd.f32 %v656, %v166
    %v659 = vrot.slane %v567, 7
    %v661 = vmul.f32 %v657, %v659
    %663 = vrot.lane.b32.xlu0 %v657, 32
    %v664 = vpop.permute.xlu0 %663
    %v666 = vmul.f32 %v657, %v664
    %668 = vrot.lane.b32.xlu0 %v666, 32
    %v669 = vpop.permute.xlu0 %668
    %v671 = vadd.f32 %v661, %v669
    %v672 = vtanh.pop %v671
    %674 = vrot.lane.b32.xlu0 %v672, 32
    %v675 = vpop.permute.xlu0 %674
    %v677 = vmul.f32 %v657, %v675
    %v679 = vrot.slane %v677, 4
    %680 = vrot.lane.b32.xlu0 %v679, 64
    %v681 = vpop.permute.xlu0 %680
    %v682 = vsel %vm167, %v681, 0
    %684 = vmatprep.subr.mxu0 0.0
    %685 = vmatpush1.msra.mxu0 0.0
    %686 = vmatprep.subr.mxu0 0.0
    %687 = vmatpush1.msra.mxu0 0.0
    %688 = vmatprep.subr.mxu0 0.0
    %689 = vmatpush1.msra.mxu0 0.0
    %690 = vmatprep.subr.mxu0 0.0
    %691 = vmatpush1.msra.mxu0 0.0
    %692 = vmatprep.subr.mxu0 0.0
    %693 = vmatpush1.msra.mxu0 0.0
    %694 = vmatprep.subr.mxu0 0.0
    %695 = vmatpush1.msra.mxu0 0.0
    %696 = vmatprep.subr.mxu0 0.0
    %697 = vmatpush1.msra.mxu0 0.0
    %698 = vmatprep.subr.mxu0 0.0
    %699 = vmatpush1.msra.mxu0 0.0
    %700 = vmatprep.subr.mxu0 0.0
    %701 = vmatpush1.msra.mxu0 0.0
    %702 = vmatprep.subr.mxu0 0.0
    %703 = vmatpush1.msra.mxu0 0.0
    %704 = vmatprep.subr.mxu0 0.0
    %705 = vmatpush1.msra.mxu0 0.0
    %706 = vmatprep.subr.mxu0 0.0
    %707 = vmatpush1.msra.mxu0 0.0
    %708 = vmatprep.subr.mxu0 0.0
    %709 = vmatpush1.msra.mxu0 %v161
    %710 = vmatprep.subr.mxu0 0.0
    %711 = vmatpush1.msra.mxu0 %v160
    %712 = vmatprep.subr.mxu0 0.0
    %713 = vmatpush1.msra.mxu0 %v159
    %714 = vmatprep.subr.mxu0 0.0
    %715 = vmatpush1.msra.mxu0 %v158
    %716 = vmatprep.subr.mxu0 0.0
    %717 = vmatpush2.msra.mxu0 0.0
    %718 = vmatprep.subr.mxu0 0.0
    %719 = vmatpush2.msra.mxu0 0.0
    %720 = vmatprep.subr.mxu0 0.0
    %721 = vmatpush2.msra.mxu0 0.0
    %722 = vmatprep.subr.mxu0 0.0
    %723 = vmatpush2.msra.mxu0 0.0
    %724 = vmatprep.subr.mxu0 0.0
    %725 = vmatpush2.msra.mxu0 0.0
    %726 = vmatprep.subr.mxu0 0.0
    %727 = vmatpush2.msra.mxu0 0.0
    %728 = vmatprep.subr.mxu0 0.0
    %729 = vmatpush2.msra.mxu0 0.0
    %730 = vmatprep.subr.mxu0 0.0
    %731 = vmatpush2.msra.mxu0 0.0
    %732 = vmatprep.subr.mxu0 0.0
    %733 = vmatpush2.msra.mxu0 0.0
    %734 = vmatprep.subr.mxu0 0.0
    %735 = vmatpush2.msra.mxu0 0.0
    %736 = vmatprep.subr.mxu0 0.0
    %737 = vmatpush2.msra.mxu0 0.0
    %738 = vmatprep.subr.mxu0 0.0
    %739 = vmatpush2.msra.mxu0 0.0
    %740 = vmatprep.subr.mxu0 0.0
    %741 = vmatpush2.msra.mxu0 0.0
    %742 = vmatprep.subr.mxu0 0.0
    %743 = vmatpush2.msra.mxu0 0.0
    %744 = vmatprep.subr.mxu0 0.0
    %745 = vmatpush2.msra.mxu0 0.0
    %746 = vmatprep.subr.mxu0 0.0
    %747 = vmatpush2.msra.mxu0 0.0
    %748 = vmatprep.mubr.f32.mxu0 0.0
    %749 = vmatmul.mubr.f32.gmra.mxu0 %v682
    %v750 = vpop.f32.mrf.mxu0
    %v751 = vadd.f32 0.0, %v750
    %v752 = vpop.f32.mrf.mxu0
    %753 = vdwg.mxu0
    %v755 = vrot.slane %v751, 3
    %v757 = vadd.f32 %v155, %v755
    %v758 = vmul.f32 %v757, %v165
    %v759 = vtanh.pop %v758
    %v760 = vmul.f32 %v759, %v165
    %v761 = vadd.f32 %v760, %v166
    %v763 = vrot.slane %v671, 7
    %v765 = vmul.f32 %v761, %v763
    %767 = vrot.lane.b32.xlu0 %v761, 32
    %v768 = vpop.permute.xlu0 %767
    %v770 = vmul.f32 %v761, %v768
    %772 = vrot.lane.b32.xlu0 %v770, 32
    %v773 = vpop.permute.xlu0 %772
    %v775 = vadd.f32 %v765, %v773
    %v776 = vtanh.pop %v775
    %778 = vrot.lane.b32.xlu0 %v776, 32
    %v779 = vpop.permute.xlu0 %778
    %v781 = vmul.f32 %v761, %v779
    %v783 = vrot.slane %v781, 5
    %784 = vrot.lane.b32.xlu0 %v783, 64
    %v785 = vpop.permute.xlu0 %784
    %v786 = vsel %vm167, %v785, 0
    %788 = vmatprep.subr.mxu0 0.0
    %789 = vmatpush1.msra.mxu0 0.0
    %790 = vmatprep.subr.mxu0 0.0
    %791 = vmatpush1.msra.mxu0 0.0
    %792 = vmatprep.subr.mxu0 0.0
    %793 = vmatpush1.msra.mxu0 0.0
    %794 = vmatprep.subr.mxu0 0.0
    %795 = vmatpush1.msra.mxu0 0.0
    %796 = vmatprep.subr.mxu0 0.0
    %797 = vmatpush1.msra.mxu0 0.0
    %798 = vmatprep.subr.mxu0 0.0
    %799 = vmatpush1.msra.mxu0 0.0
    %800 = vmatprep.subr.mxu0 0.0
    %801 = vmatpush1.msra.mxu0 0.0
    %802 = vmatprep.subr.mxu0 0.0
    %803 = vmatpush1.msra.mxu0 0.0
    %804 = vmatprep.subr.mxu0 0.0
    %805 = vmatpush1.msra.mxu0 0.0
    %806 = vmatprep.subr.mxu0 0.0
    %807 = vmatpush1.msra.mxu0 0.0
    %808 = vmatprep.subr.mxu0 0.0
    %809 = vmatpush1.msra.mxu0 0.0
    %810 = vmatprep.subr.mxu0 0.0
    %811 = vmatpush1.msra.mxu0 0.0
    %812 = vmatprep.subr.mxu0 0.0
    %813 = vmatpush1.msra.mxu0 %v161
    %814 = vmatprep.subr.mxu0 0.0
    %815 = vmatpush1.msra.mxu0 %v160
    %816 = vmatprep.subr.mxu0 0.0
    %817 = vmatpush1.msra.mxu0 %v159
    %818 = vmatprep.subr.mxu0 0.0
    %819 = vmatpush1.msra.mxu0 %v158
    %820 = vmatprep.subr.mxu0 0.0
    %821 = vmatpush2.msra.mxu0 0.0
    %822 = vmatprep.subr.mxu0 0.0
    %823 = vmatpush2.msra.mxu0 0.0
    %824 = vmatprep.subr.mxu0 0.0
    %825 = vmatpush2.msra.mxu0 0.0
    %826 = vmatprep.subr.mxu0 0.0
    %827 = vmatpush2.msra.mxu0 0.0
    %828 = vmatprep.subr.mxu0 0.0
    %829 = vmatpush2.msra.mxu0 0.0
    %830 = vmatprep.subr.mxu0 0.0
    %831 = vmatpush2.msra.mxu0 0.0
    %832 = vmatprep.subr.mxu0 0.0
    %833 = vmatpush2.msra.mxu0 0.0
    %834 = vmatprep.subr.mxu0 0.0
    %835 = vmatpush2.msra.mxu0 0.0
    %836 = vmatprep.subr.mxu0 0.0
    %837 = vmatpush2.msra.mxu0 0.0
    %838 = vmatprep.subr.mxu0 0.0
    %839 = vmatpush2.msra.mxu0 0.0
    %840 = vmatprep.subr.mxu0 0.0
    %841 = vmatpush2.msra.mxu0 0.0
    %842 = vmatprep.subr.mxu0 0.0
    %843 = vmatpush2.msra.mxu0 0.0
    %844 = vmatprep.subr.mxu0 0.0
    %845 = vmatpush2.msra.mxu0 0.0
    %846 = vmatprep.subr.mxu0 0.0
    %847 = vmatpush2.msra.mxu0 0.0
    %848 = vmatprep.subr.mxu0 0.0
    %849 = vmatpush2.msra.mxu0 0.0
    %850 = vmatprep.subr.mxu0 0.0
    %851 = vmatpush2.msra.mxu0 0.0
    %852 = vmatprep.mubr.f32.mxu0 0.0
    %853 = vmatmul.mubr.f32.gmra.mxu0 %v786
    %v854 = vpop.f32.mrf.mxu0
    %v855 = vadd.f32 0.0, %v854
    %v856 = vpop.f32.mrf.mxu0
    %857 = vdwg.mxu0
    %v859 = vrot.slane %v855, 2
    %v861 = vadd.f32 %v155, %v859
    %v862 = vmul.f32 %v861, %v165
    %v863 = vtanh.pop %v862
    %v864 = vmul.f32 %v863, %v165
    %v865 = vadd.f32 %v864, %v166
    %v867 = vrot.slane %v775, 7
    %v869 = vmul.f32 %v865, %v867
    %871 = vrot.lane.b32.xlu0 %v865, 32
    %v872 = vpop.permute.xlu0 %871
    %v874 = vmul.f32 %v865, %v872
    %876 = vrot.lane.b32.xlu0 %v874, 32
    %v877 = vpop.permute.xlu0 %876
    %v879 = vadd.f32 %v869, %v877
    %v880 = vtanh.pop %v879
    %882 = vrot.lane.b32.xlu0 %v880, 32
    %v883 = vpop.permute.xlu0 %882
    %v885 = vmul.f32 %v865, %v883
    %v887 = vrot.slane %v885, 6
    %888 = vrot.lane.b32.xlu0 %v887, 64
    %v889 = vpop.permute.xlu0 %888
    %v890 = vsel %vm167, %v889, 0
    %892 = vmatprep.subr.mxu0 0.0
    %893 = vmatpush1.msra.mxu0 0.0
    %894 = vmatprep.subr.mxu0 0.0
    %895 = vmatpush1.msra.mxu0 0.0
    %896 = vmatprep.subr.mxu0 0.0
    %897 = vmatpush1.msra.mxu0 0.0
    %898 = vmatprep.subr.mxu0 0.0
    %899 = vmatpush1.msra.mxu0 0.0
    %900 = vmatprep.subr.mxu0 0.0
    %901 = vmatpush1.msra.mxu0 0.0
    %902 = vmatprep.subr.mxu0 0.0
    %903 = vmatpush1.msra.mxu0 0.0
    %904 = vmatprep.subr.mxu0 0.0
    %905 = vmatpush1.msra.mxu0 0.0
    %906 = vmatprep.subr.mxu0 0.0
    %907 = vmatpush1.msra.mxu0 0.0
    %908 = vmatprep.subr.mxu0 0.0
    %909 = vmatpush1.msra.mxu0 0.0
    %910 = vmatprep.subr.mxu0 0.0
    %911 = vmatpush1.msra.mxu0 0.0
    %912 = vmatprep.subr.mxu0 0.0
    %913 = vmatpush1.msra.mxu0 0.0
    %914 = vmatprep.subr.mxu0 0.0
    %915 = vmatpush1.msra.mxu0 0.0
    %916 = vmatprep.subr.mxu0 0.0
    %917 = vmatpush1.msra.mxu0 %v161
    %918 = vmatprep.subr.mxu0 0.0
    %919 = vmatpush1.msra.mxu0 %v160
    %920 = vmatprep.subr.mxu0 0.0
    %921 = vmatpush1.msra.mxu0 %v159
    %922 = vmatprep.subr.mxu0 0.0
    %923 = vmatpush1.msra.mxu0 %v158
    %924 = vmatprep.subr.mxu0 0.0
    %925 = vmatpush2.msra.mxu0 0.0
    %926 = vmatprep.subr.mxu0 0.0
    %927 = vmatpush2.msra.mxu0 0.0
    %928 = vmatprep.subr.mxu0 0.0
    %929 = vmatpush2.msra.mxu0 0.0
    %930 = vmatprep.subr.mxu0 0.0
    %931 = vmatpush2.msra.mxu0 0.0
    %932 = vmatprep.subr.mxu0 0.0
    %933 = vmatpush2.msra.mxu0 0.0
    %934 = vmatprep.subr.mxu0 0.0
    %935 = vmatpush2.msra.mxu0 0.0
    %936 = vmatprep.subr.mxu0 0.0
    %937 = vmatpush2.msra.mxu0 0.0
    %938 = vmatprep.subr.mxu0 0.0
    %939 = vmatpush2.msra.mxu0 0.0
    %940 = vmatprep.subr.mxu0 0.0
    %941 = vmatpush2.msra.mxu0 0.0
    %942 = vmatprep.subr.mxu0 0.0
    %943 = vmatpush2.msra.mxu0 0.0
    %944 = vmatprep.subr.mxu0 0.0
    %945 = vmatpush2.msra.mxu0 0.0
    %946 = vmatprep.subr.mxu0 0.0
    %947 = vmatpush2.msra.mxu0 0.0
    %948 = vmatprep.subr.mxu0 0.0
    %949 = vmatpush2.msra.mxu0 0.0
    %950 = vmatprep.subr.mxu0 0.0
    %951 = vmatpush2.msra.mxu0 0.0
    %952 = vmatprep.subr.mxu0 0.0
    %953 = vmatpush2.msra.mxu0 0.0
    %954 = vmatprep.subr.mxu0 0.0
    %955 = vmatpush2.msra.mxu0 0.0
    %956 = vmatprep.mubr.f32.mxu0 0.0
    %957 = vmatmul.mubr.f32.gmra.mxu0 %v890
    %v958 = vpop.f32.mrf.mxu0
    %v959 = vadd.f32 0.0, %v958
    %v960 = vpop.f32.mrf.mxu0
    %961 = vdwg.mxu0
    %v963 = vrot.slane %v959, 1
    %v965 = vadd.f32 %v155, %v963
    %v966 = vmul.f32 %v965, %v165
    %v967 = vtanh.pop %v966
    %v968 = vmul.f32 %v967, %v165
    %v969 = vadd.f32 %v968, %v166
    %v971 = vrot.slane %v879, 7
    %v973 = vmul.f32 %v969, %v971
    %975 = vrot.lane.b32.xlu0 %v969, 32
    %v976 = vpop.permute.xlu0 %975
    %v978 = vmul.f32 %v969, %v976
    %980 = vrot.lane.b32.xlu0 %v978, 32
    %v981 = vpop.permute.xlu0 %980
    %v983 = vadd.f32 %v973, %v981
    %v984 = vtanh.pop %v983
    %986 = vrot.lane.b32.xlu0 %v984, 32
    %v987 = vpop.permute.xlu0 %986
    %v989 = vmul.f32 %v969, %v987
    %vm990 = vcmask 1040384
    %v991 = vsel %vm990, %v262, %v365
    %vm992 = vcmask 1041408
    %v993 = vsel %vm992, %v991, %v469
    %vm994 = vcmask 1042432
    %v995 = vsel %vm994, %v993, %v573
    %vm996 = vcmask 1043456
    %v997 = vsel %vm996, %v995, %v677
    %vm998 = vcmask 1044480
    %v999 = vsel %vm998, %v997, %v781
    %vm1000 = vcmask 1045504
    %v1001 = vsel %vm1000, %v999, %v885
    %vm1002 = vcmask 1046528
    %v1003 = vsel %vm1002, %v1001, %v989
    %v1004 = vld [vmem:[#allocation8] sm:$0xff]
    %v1005 = vld [vmem:[#allocation8 + $0x8] sm:$0xff]
    %v1006 = vld [vmem:[#allocation8 + $0x10] sm:$0xff]
    %v1007 = vld [vmem:[#allocation8 + $0x18] sm:$0xff]
    %v1008 = vld [vmem:[%s5] sm:$0x1]
    %v1010 = vlaneseq
    %v1011 = vshrl.u32 %v1010, 7
    %v1012 = vsub.s32 0, %v1011
    %v1013 = vrot.slane %v1008, %v1012
    %1016 = vrot.lane.b32.xlu0 %v1003, 64
    %v1017 = vpop.permute.xlu0 %1016
    %v1018 = vsel %vm167, %v1017, 0
    %1020 = vmatprep.subr.mxu0 0.0
    %1021 = vmatpush1.msra.mxu0 0.0
    %1022 = vmatprep.subr.mxu0 0.0
    %1023 = vmatpush1.msra.mxu0 0.0
    %1024 = vmatprep.subr.mxu0 0.0
    %1025 = vmatpush1.msra.mxu0 0.0
    %1026 = vmatprep.subr.mxu0 0.0
    %1027 = vmatpush1.msra.mxu0 0.0
    %1028 = vmatprep.subr.mxu0 0.0
    %1029 = vmatpush1.msra.mxu0 0.0
    %1030 = vmatprep.subr.mxu0 0.0
    %1031 = vmatpush1.msra.mxu0 0.0
    %1032 = vmatprep.subr.mxu0 0.0
    %1033 = vmatpush1.msra.mxu0 0.0
    %1034 = vmatprep.subr.mxu0 0.0
    %1035 = vmatpush1.msra.mxu0 0.0
    %1036 = vmatprep.subr.mxu0 0.0
    %1037 = vmatpush1.msra.mxu0 0.0
    %1038 = vmatprep.subr.mxu0 0.0
    %1039 = vmatpush1.msra.mxu0 0.0
    %1040 = vmatprep.subr.mxu0 0.0
    %1041 = vmatpush1.msra.mxu0 0.0
    %1042 = vmatprep.subr.mxu0 0.0
    %1043 = vmatpush1.msra.mxu0 0.0
    %1044 = vmatprep.subr.mxu0 0.0
    %1045 = vmatpush1.msra.mxu0 %v1007
    %1046 = vmatprep.subr.mxu0 0.0
    %1047 = vmatpush1.msra.mxu0 %v1006
    %1048 = vmatprep.subr.mxu0 0.0
    %1049 = vmatpush1.msra.mxu0 %v1005
    %1050 = vmatprep.subr.mxu0 0.0
    %1051 = vmatpush1.msra.mxu0 %v1004
    %1052 = vmatprep.subr.mxu0 0.0
    %1053 = vmatpush2.msra.mxu0 0.0
    %1054 = vmatprep.subr.mxu0 0.0
    %1055 = vmatpush2.msra.mxu0 0.0
    %1056 = vmatprep.subr.mxu0 0.0
    %1057 = vmatpush2.msra.mxu0 0.0
    %1058 = vmatprep.subr.mxu0 0.0
    %1059 = vmatpush2.msra.mxu0 0.0
    %1060 = vmatprep.subr.mxu0 0.0
    %1061 = vmatpush2.msra.mxu0 0.0
    %1062 = vmatprep.subr.mxu0 0.0
    %1063 = vmatpush2.msra.mxu0 0.0
    %1064 = vmatprep.subr.mxu0 0.0
    %1065 = vmatpush2.msra.mxu0 0.0
    %1066 = vmatprep.subr.mxu0 0.0
    %1067 = vmatpush2.msra.mxu0 0.0
    %1068 = vmatprep.subr.mxu0 0.0
    %1069 = vmatpush2.msra.mxu0 0.0
    %1070 = vmatprep.subr.mxu0 0.0
    %1071 = vmatpush2.msra.mxu0 0.0
    %1072 = vmatprep.subr.mxu0 0.0
    %1073 = vmatpush2.msra.mxu0 0.0
    %1074 = vmatprep.subr.mxu0 0.0
    %1075 = vmatpush2.msra.mxu0 0.0
    %1076 = vmatprep.subr.mxu0 0.0
    %1077 = vmatpush2.msra.mxu0 0.0
    %1078 = vmatprep.subr.mxu0 0.0
    %1079 = vmatpush2.msra.mxu0 0.0
    %1080 = vmatprep.subr.mxu0 0.0
    %1081 = vmatpush2.msra.mxu0 0.0
    %1082 = vmatprep.subr.mxu0 0.0
    %1083 = vmatpush2.msra.mxu0 0.0
    %1084 = vmatprep.mubr.f32.mxu0 0.0
    %1085 = vmatmul.mubr.f32.gmra.mxu0 %v1018
    %v1086 = vpop.f32.mrf.mxu0
    %v1087 = vadd.f32 %v1013, %v1086
    %v1088 = vpop.f32.mrf.mxu0
    %1089 = vdwg.mxu0
    %1090 = vst [vmem:[#allocation10] sm:$0xff] %v1087
    // Predicated region
    $region42: #{tpu_custom_call.1} parent=1 // pred_check
      _
    $region43: #{tpu_custom_call.1} parent=1 // pred_check_branch
      %1092 = sbr.rel (0) target = $region45
    $region44: #{tpu_custom_call.1} parent=1 // pred_region
      %s1094 = ssub.s32 128, 128
      %1095 = vsyncadd [#allocation4], %s1094
      %s1097 = sshll.u32 [#allocation10], 4
      %s1098 = int_to_ptr.vmem [resolvable:$true] %s1097
      %1100 = dma.vmem_to_hbm [thread:$0]  %s1098, 128, %s6, [#allocation4]
    $region45: #{tpu_custom_call.1} parent=1 // pred_fallthru
      _
    // Predicated region
    $region46: #{tpu_custom_call.1} parent=1 // pred_check
      _
    $region47: #{tpu_custom_call.1} parent=1 // pred_check_branch
      %1102 = sbr.rel (0) target = $region49
    $region48: #{tpu_custom_call.1} parent=1 // pred_region
      %1103 = dma.done [#allocation4], 128
    $region49: #{tpu_custom_call.1} parent=1 // pred_fallthru
      _
    %1104 = vsyncpa [#allocation3], 1
    %1105 = vsyncpa [#allocation6], 1
    %1106 = vsyncpa [#allocation9], 1
    %1107 = vsyncpa [#allocation4], 1

</llo_original>
